<compile_context>
chip_gen: v7x
topology: tpu7x:2x2x1
jax: 0.10.0
libtpu: 0.0.40
codegen_flags: <defaults>
</compile_context>

<pallas_src>
import functools

import jax
import jax.numpy as jnp
from jax.experimental import pallas as pl
from jax.experimental.pallas import tpu as pltpu


def _pool_nonoverlap_kernel(x_ref, o_ref, *, kernel_size, stride, tile_t, poolingtype):
    """kernel_size <= stride: windows never straddle a tile boundary.

    x_ref: (tile_t * stride, R, L); o_ref: (tile_t, R, L).
    Output row j reduces input rows j*stride + k for k in [0, kernel_size).
    The block is loaded once and its leading dim split (layout-free reshape),
    so each input vreg is read exactly once (protects the 2-vld/1-vst budget).
    """
    blk = x_ref[...]
    _, r, l = blk.shape
    w = blk.reshape(tile_t, stride, r, l)
    if kernel_size < stride:
        w = w[:, :kernel_size]
    if poolingtype == "average":
        acc = jnp.sum(w.astype(jnp.float32), axis=1) * (1.0 / float(kernel_size))
    else:
        acc = jnp.max(w, axis=1)
    o_ref[...] = acc.astype(o_ref.dtype)


def _pool_overlap_kernel(x_ref, o_ref, *, kernel_size, stride, tile_t, poolingtype):
    """kernel_size > stride: overlapping windows, halo-tiled input block.

    x_ref: ((tile_t - 1)*stride + kernel_size, R, L); o_ref: (tile_t, R, L).
    Each tap is a leading-axis (row) slice over whole (R, L) slabs -- no
    sublane/lane shuffles. kernel_size taps are unrolled (static & small).
    """
    acc_dtype = jnp.float32 if poolingtype == "average" else o_ref.dtype

    def tap(k):
        sl = pl.ds(k, tile_t) if stride == 1 else pl.ds(k, tile_t, stride)
        return x_ref[sl].astype(acc_dtype)

    acc = tap(0)
    for k in range(1, kernel_size):
        w = tap(k)
        acc = acc + w if poolingtype == "average" else jnp.maximum(acc, w)
    if poolingtype == "average":
        acc = acc * (1.0 / float(kernel_size))
    o_ref[...] = acc.astype(o_ref.dtype)


def _vreg_padded_slab_bytes(rows, lanes, itemsize):
    """VMEM bytes one (rows, lanes) slab occupies under (8*pack, 128) tiling."""
    packing = max(1, 4 // itemsize)  # f32: 8 rows/vreg, bf16: 16, int8/fp8: 32
    sub = 8 * packing
    return pl.cdiv(rows, sub) * pl.cdiv(lanes, 128) * 4096


def _vmem_capacity_bytes():
    try:
        return int(pltpu.get_tpu_info().vmem_capacity_bytes)
    except Exception:
        return 64 << 20  # conservative: v7x per-TC physical VMEM


def pooling1d_subsampler(
    x_tbc,
    x_lengths,
    *,
    kernel_size: int = 2,
    stride: int = 2,
    padding: int = 0,
    poolingtype: str = "average",
):
    """x_tbc: (T, B, C) float array; x_lengths: (B,) int array."""
    T, B, C = x_tbc.shape
    t_out = (T + 2 * padding - kernel_size) // stride + 1
    assert t_out >= 1, "output length must be >= 1"

    x = x_tbc
    if padding > 0:
        # AvgPool1d (count_include_pad=True default) pads with 0; MaxPool1d with -inf.
        # TODO(synk): fold padding into the kernel (masked first/last tile) to
        # avoid this extra HBM read+write pass; padding=0 is the default config.
        pad_val = 0.0 if poolingtype == "average" else -jnp.inf
        x = jnp.pad(x, ((padding, padding), (0, 0), (0, 0)), constant_values=pad_val)
    T_pad = x.shape[0]

    # Lane/sublane-dense trailing slab (biggest single lever for small B):
    # collapse (B, C) -> (B*C//128, 128) when divisible. Row-major collapse /
    # split of trailing dims is a free bitcast in XLA; time stays the leading
    # non-vreg axis so the pooling taps remain shuffle-free row slices.
    lane_dense = (B * C) % 128 == 0
    if lane_dense:
        rows, lanes = (B * C) // 128, 128
        x = x.reshape(T_pad, rows, lanes)
    else:
        rows, lanes = B, C

    itemsize = jnp.dtype(x.dtype).itemsize
    slab_bytes = _vreg_padded_slab_bytes(rows, lanes, itemsize)  # one time-step slab

    vmem_cap = _vmem_capacity_bytes()
    # Bigger tiles amortize the ~0.35us/step pipeline overhead on 128-MiB-VMEM
    # parts (v5e/v6e); stay at 4 MiB on v7x (64 MiB physical per TC).
    target_in_tile_bytes = (8 << 20) if vmem_cap >= (100 << 20) else (4 << 20)

    in_bytes_per_out_row = stride * slab_bytes
    tile_t = max(1, min(t_out, target_in_tile_bytes // max(in_bytes_per_out_row, 1)))
    if t_out >= 8:
        # >= 4 grid steps: each v7x TensorCore gets >= 2 pipelined iterations;
        # costs nothing on single-TC v5e/v6e.
        tile_t = min(tile_t, pl.cdiv(t_out, 4))
    grid_t = pl.cdiv(t_out, tile_t)

    if kernel_size <= stride:
        # Non-overlapping (or gapped) windows: plain blocked time tiles.
        t_in_block = tile_t * stride
        in_spec = pl.BlockSpec((t_in_block, rows, lanes), lambda i: (i, 0, 0))
        kernel = functools.partial(
            _pool_nonoverlap_kernel,
            kernel_size=kernel_size, stride=stride, tile_t=tile_t,
            poolingtype=poolingtype,
        )
    else:
        # Halo-tiled path: the input window for output tile i starts at element
        # offset i*tile_t*stride and spans (tile_t-1)*stride + kernel_size rows.
        # Consecutive windows overlap by (kernel_size - stride) rows, which
        # blocked indexing cannot express -> element-offset index map on time.
        t_in_block = (tile_t - 1) * stride + kernel_size
        # Guarantee the last window never reads past the end of the array.
        # The tail rows only feed output rows >= t_out, which are never stored.
        needed = (grid_t - 1) * tile_t * stride + t_in_block
        if needed > T_pad:
            x = jnp.pad(x, ((0, needed - T_pad),) + ((0, 0),) * (x.ndim - 1))
            T_pad = needed
        in_spec = pl.BlockSpec(
            (pl.Element(t_in_block), rows, lanes),
            lambda i: (i * tile_t * stride, 0, 0),
        )
        kernel = functools.partial(
            _pool_overlap_kernel,
            kernel_size=kernel_size, stride=stride, tile_t=tile_t,
            poolingtype=poolingtype,
        )

    out_spec = pl.BlockSpec((tile_t, rows, lanes), lambda i: (i, 0, 0))

    in_tile_bytes = t_in_block * slab_bytes
    out_tile_bytes = tile_t * slab_bytes
    scoped_bytes = 2 * (in_tile_bytes + out_tile_bytes)  # double-buffered in + out
    compiler_kwargs = dict(dimension_semantics=("parallel",))
    if scoped_bytes > (12 << 20):
        # Raise the scoped-VMEM limit (defaults: 16 MiB v5e / 32 MiB v6e,v7x)
        # but never request more than ~75% of physical VMEM (v7x has 64 MiB).
        compiler_kwargs["vmem_limit_bytes"] = int(
            min(scoped_bytes + (4 << 20), (vmem_cap * 3) // 4)
        )

    # bytes_accessed includes the (8,128)/dtype-packing layout padding (and the
    # jnp.pad pass when padding > 0) so XLA schedules around the true DMA cost.
    pad_pass_bytes = 2 * T * slab_bytes if padding > 0 else 0
    cost = pl.CostEstimate(
        flops=int(kernel_size * t_out * B * C),
        transcendentals=0,
        bytes_accessed=int((T_pad + t_out) * slab_bytes + pad_pass_bytes),
    )

    out = pl.pallas_call(
        kernel,
        out_shape=jax.ShapeDtypeStruct((t_out, rows, lanes), x_tbc.dtype),
        grid=(grid_t,),
        in_specs=[in_spec],
        out_specs=out_spec,
        compiler_params=pltpu.CompilerParams(**compiler_kwargs),
        cost_estimate=cost,
    )(x)

    out_tbc = out.reshape(t_out, B, C) if lane_dense else out

    # get_out_seq_lens_tensor: floor((len + 2p - k)/s + 1) -- pure integer math.
    # TODO(synk): torch returns int64 (.long()); int32 is numerically equivalent here.
    out_lengths = ((x_lengths + 2 * padding - kernel_size) // stride + 1).astype(jnp.int32)

    return out_tbc, out_lengths


if __name__ == "__main__":
    key = jax.random.PRNGKey(0)

    def ref_pool(x_tbc, kernel_size, stride, padding, poolingtype):
        T = x_tbc.shape[0]
        pad_val = 0.0 if poolingtype == "average" else -jnp.inf
        xp = jnp.pad(
            x_tbc, ((padding, padding), (0, 0), (0, 0)), constant_values=pad_val
        )
        t_out = (T + 2 * padding - kernel_size) // stride + 1
        taps = [
            xp[k : k + (t_out - 1) * stride + 1 : stride] for k in range(kernel_size)
        ]
        w = jnp.stack(taps, axis=0)
        return jnp.mean(w, axis=0) if poolingtype == "average" else jnp.max(w, axis=0)

    def ref_lens(lens, kernel_size, stride, padding):
        return ((lens + 2 * padding - kernel_size) // stride + 1).astype(jnp.int32)

    configs = [
        # (T, B, C, kernel_size, stride, padding, poolingtype)
        (16, 2, 8, 2, 2, 0, "average"),    # default config, small shapes
        (250, 2, 8, 2, 2, 0, "average"),   # multi-tile grid, partial last tile
        (64, 2, 128, 2, 2, 0, "max"),      # lane-dense (B*C % 128 == 0) path
        (16, 2, 8, 3, 2, 1, "max"),        # overlapping windows + padding
        (250, 2, 8, 3, 2, 1, "average"),   # overlapping windows, halo-tiled grid
    ]
    for (T, B, C, k, s, p, ptype) in configs:
        kx, kl, key = jax.random.split(key, 3)
        x = jax.random.normal(kx, (T, B, C), dtype=jnp.float32)
        lens = jax.random.randint(kl, (B,), 1, T + 1, dtype=jnp.int32)

        out, out_lens = pooling1d_subsampler(
            x, lens, kernel_size=k, stride=s, padding=p, poolingtype=ptype
        )
        jax.block_until_ready(out)
        jax.block_until_ready(out_lens)

        ref = ref_pool(x, k, s, p, ptype)
        assert out.shape == ref.shape, (out.shape, ref.shape)
        assert jnp.allclose(out, ref, atol=1e-5, rtol=1e-5), (
            f"pooling output mismatch for config {(T, B, C, k, s, p, ptype)}"
        )
        assert jnp.array_equal(out_lens, ref_lens(lens, k, s, p)), (
            f"length computation mismatch for config {(T, B, C, k, s, p, ptype)}"
        )

    print("KERNEL_OK")
</pallas_src>

<mosaic_0001>
module attributes {stable_mosaic.version = 11 : i64} {
  func.func @_pool_nonoverlap_kernel(%arg0: i32, %arg1: memref<4x2x8xf32, #tpu.memory_space<vmem>>, %arg2: memref<2x2x8xf32, #tpu.memory_space<vmem>>) attributes {dimension_semantics = [#tpu.dimension_semantics<parallel>], iteration_bounds = array<i64: 4>, scalar_prefetch = 0 : i64, scratch_operands = 0 : i64, tpu.core_type = #tpu.core_type<tc>, window_params = [{transform_indices = @transform_0, window_bounds = array<i64: 4, 2, 8>}, {transform_indices = @transform_1, window_bounds = array<i64: 2, 2, 8>}]} {
    %c0 = arith.constant 0 : index
    %c0_0 = arith.constant 0 : index
    %c0_1 = arith.constant 0 : index
    %0 = vector.load %arg1[%c0, %c0_0, %c0_1] : memref<4x2x8xf32, #tpu.memory_space<vmem>>, vector<4x2x8xf32>
    %1 = vector.shape_cast %0 : vector<4x2x8xf32> to vector<2x2x2x8xf32>
    %cst = arith.constant dense<0.000000e+00> : vector<2x2x8xf32>
    %2 = vector.multi_reduction <add>, %1, %cst [1] : vector<2x2x2x8xf32> to vector<2x2x8xf32>
    %cst_2 = arith.constant 5.000000e-01 : f32
    %3 = vector.broadcast %cst_2 : f32 to vector<2x2x8xf32>
    %4 = arith.mulf %2, %3 : vector<2x2x8xf32>
    %c0_3 = arith.constant 0 : index
    %c0_4 = arith.constant 0 : index
    %c0_5 = arith.constant 0 : index
    %5 = vector.load %arg2[%c0_3, %c0_4, %c0_5] : memref<2x2x8xf32, #tpu.memory_space<vmem>>, vector<2x2x8xf32>
    tpu.vector_store %arg2[%c0_3, %c0_4, %c0_5], %4 {strides = array<i32>} : memref<2x2x8xf32, #tpu.memory_space<vmem>>, vector<2x2x8xf32>,
    return
  }
  func.func @transform_0(%arg0: i32) -> (i32, i32, i32) {
    %c0_i32 = arith.constant 0 : i32
    %c0_i32_0 = arith.constant 0 : i32
    %c0_i32_1 = arith.constant 0 : i32
    return %arg0, %c0_i32, %c0_i32_0 : i32, i32, i32
  }
  func.func @transform_1(%arg0: i32) -> (i32, i32, i32) {
    %c0_i32 = arith.constant 0 : i32
    %c0_i32_0 = arith.constant 0 : i32
    %c0_i32_1 = arith.constant 0 : i32
    return %arg0, %c0_i32, %c0_i32_0 : i32, i32, i32
  }
}

</mosaic_0001>

<llo_original>
// kernel: tpu_custom_call.1
$region0: #{tpu_custom_call.1}
  #allocation0 [shape = 'u32[]', space=smem, size = 0x4, offset = 0x4, fixed_abs, tag = 'smem constant byte address 0x4 - core index']
  #allocation1 [shape = 'u32[144,128]{1,0:T(1,128)}', space=vmem, size = 0x12000, scoped, tag = 'internal scratch']
  %s0 = inlined_call_operand.vmem [shape: f32[16,2,8], index: 0, kind: input, shape index: {}]
  %s1 = inlined_call_operand.hbm [shape: f32[8,2,8], index: 1, kind: output, shape index: {}]
  %s2 = sld [smem:[#allocation0]]
  $region37: #{tpu_custom_call.1} parent=0
    _
  %s4 = ssub.s32 1, %s2
  %s5 = scalar_select 0, %s4, %s2
  $region1: #{tpu_custom_call.1} parent=0
    #allocation2 [shape = 'u8[4096]{0}', space=vmem, size = 0x1000, scoped, tag = 'output window, operand 0']
    #allocation3 [shape = 's32[2]{0}', space=sflag, size = 0x8, scoped, tag = 'scoped memory for tpu_custom_call.1']
    %6 = vsyncpa [#allocation3], 0
    %s7 = scalar_lea.sflag [#allocation3], 1
    %8 = vsyncpa %s7, 0
    loop: start=0, step=1, limit=6
    $region2: #{tpu_custom_call.1} parent=1 // loop_pre_header
      _
    $region3: #{tpu_custom_call.1} parent=1 // loop_header
      %s10 = sphi 0, %s14
      %p11 = scmp.ge.s32.totalorder %s10, 6
      %s20 = sphi 0, %s22
      %s23 = sphi 0, %s20
      %s24 = sphi 0, %s23
      %s40 = sphi 0, %s24
      %s46 = sphi 0, %s48
      %s49 = sphi 0, %s46
      %s50 = sphi 0, %s49
      %s66 = sphi 0, %s50
    $region4: #{tpu_custom_call.1} parent=1 // loop_header_branch
      %13 = sbr.rel (%p11) target = $region8
    $region5: #{tpu_custom_call.1} parent=1 // loop_body
      %s15 = ssub.s32 %s10, 1
      %s16 = ssub.s32 %s10, 2
      %s17 = sadd.s32 %s10, 1
      %s18 = ssub.s32 %s10, %s17
      %p19 = scmp.eq.s32.totalorder %s18, 0
      %s21 = sadd.s32 %s20, 1
      %s22 = scalar_select %p19, %s20, %s21
      %p25 = pneg %p19
      %p26 = scmp.eq.s32.totalorder %s10, 3
      %p27 = por %p25, %p26
      %p28 = scmp.ne.s32.totalorder %s20, %s23
      %p29 = scmp.eq.s32.totalorder %s10, 0
      %p30 = por %p28, %p29
      %p31 = scmp.ne.s32.totalorder %s20, %s23
      %p32 = scmp.eq.s32.totalorder %s15, 3
      %p33 = por %p31, %p32
      %p34 = scmp.ne.s32.totalorder %s23, %s24
      %p35 = scmp.eq.s32.totalorder %s15, 0
      %p36 = por %p34, %p35
      %p37 = scmp.ne.s32.totalorder %s23, %s24
      %p38 = scmp.eq.s32.totalorder %s16, 3
      %p39 = por %p37, %p38
      %p41 = scmp.ne.s32.totalorder %s24, %s40
      %p42 = scmp.eq.s32.totalorder %s16, 0
      %p43 = por %p41, %p42
      %s44 = ssub.s32 %s10, %s17
      %p45 = scmp.eq.s32.totalorder %s44, 0
      %s47 = sadd.s32 %s46, 1
      %s48 = scalar_select %p45, %s46, %s47
      %p51 = pneg %p45
      %p52 = scmp.eq.s32.totalorder %s10, 3
      %p53 = por %p51, %p52
      %p54 = scmp.ne.s32.totalorder %s46, %s49
      %p55 = scmp.eq.s32.totalorder %s10, 0
      %p56 = por %p54, %p55
      %p57 = scmp.ne.s32.totalorder %s46, %s49
      %p58 = scmp.eq.s32.totalorder %s15, 3
      %p59 = por %p57, %p58
      %p60 = scmp.ne.s32.totalorder %s49, %s50
      %p61 = scmp.eq.s32.totalorder %s15, 0
      %p62 = por %p60, %p61
      %p63 = scmp.ne.s32.totalorder %s49, %s50
      %p64 = scmp.eq.s32.totalorder %s16, 3
      %p65 = por %p63, %p64
      %p67 = scmp.ne.s32.totalorder %s50, %s66
      %p68 = scmp.eq.s32.totalorder %s16, 0
      %p69 = por %p67, %p68
      %p70 = scmp.le.s32.totalorder 1, %s10
      %p71 = scmp.lt.s32.totalorder %s10, 5
      %p72 = pnand %p70, %p71
      %p73 = pneg %p72
      // Predicated region
      $region9: #{tpu_custom_call.1} parent=5 // pred_check
        _
      $region10: #{tpu_custom_call.1} parent=5 // pred_check_branch
        %75 = sbr.rel (%p72) target = $region12
      $region11: #{tpu_custom_call.1} parent=5 // pred_region
        %s76 = ssub.s32 %s10, 1
      $region12: #{tpu_custom_call.1} parent=5 // pred_fallthru
        _
      %p77 = scmp.lt.s32.totalorder %s10, 4
      // Predicated region
      $region13: #{tpu_custom_call.1} parent=5 // pred_check
        %p78 = pneg %p77
      $region14: #{tpu_custom_call.1} parent=5 // pred_check_branch
        %80 = sbr.rel (%p78) target = $region16
      $region15: #{tpu_custom_call.1} parent=5 // pred_region
        // Predicated region
        $region17: #{tpu_custom_call.1} parent=15 // pred_check
          %p81 = pneg %p30
        $region18: #{tpu_custom_call.1} parent=15 // pred_check_branch
          %83 = sbr.rel (%p81) target = $region20
        $region19: #{tpu_custom_call.1} parent=15 // pred_region
          %s84 = smul.u32 4, %s10
          %p85 = scmp.lt.s32.totalorder %s84, 15
          %s86 = scalar_select %p85, %s84, 15
          %s87 = smul.addr %s86, 2
          %s88 = scalar_lea.vmem %s0, %s87
          %s89 = smul.u32 4, %s10
        $region20: #{tpu_custom_call.1} parent=15 // pred_fallthru
          _
      $region16: #{tpu_custom_call.1} parent=5 // pred_fallthru
        _
      %p90 = scmp.le.s32.totalorder 1, %s10
      %p91 = scmp.lt.s32.totalorder %s10, 5
      %p92 = pnand %p90, %p91
      %p93 = pneg %p92
      // Predicated region
      $region21: #{tpu_custom_call.1} parent=5 // pred_check
        _
      $region22: #{tpu_custom_call.1} parent=5 // pred_check_branch
        %95 = sbr.rel (%p92) target = $region24
      $region23: #{tpu_custom_call.1} parent=5 // pred_region
        %s96 = ssub.s32 %s10, 1
        %s97 = smul.u32 4, %s15
        %p98 = scmp.lt.s32.totalorder %s97, 15
        %s99 = scalar_select %p98, %s97, 15
        %s100 = smul.addr %s99, 2
        %s101 = scalar_lea.vmem %s0, %s100
        %p102 = pneg %p36
        %p103 = pneg %p33
        %p104 = pneg %p62
        %p105 = pneg %p59
        %s106 = sand.u32 %s49, 1
        %s107 = scalar_lea.sflag [#allocation3], %s106
        %s108 = sand.u32 %s49, 1
        %s109 = smul.addr %s108, 4
        %s110 = scalar_lea.vmem [#allocation2], %s109
        %s111 = smul.u32 4, %s15
        %p112 = scmp.lt.s32.totalorder %s111, 15
        %s113 = scalar_select %p112, %s111, 15
        %s114 = smul.addr %s113, 2
        %s115 = scalar_lea.vmem %s0, %s114
        %s116 = smul.u32 4, %s15
        %s117 = smul.u32 2, %s15
        %v118 = vld [vmem:[%s115] sm:$0x3]
        %v119 = vld [vmem:[%s115 + $0x2] sm:$0x3]
        %v120 = vld [vmem:[%s115 + $0x4] sm:$0x3]
        %v121 = vld [vmem:[%s115 + $0x6] sm:$0x3]
        %vm122 = vcmask 58368
        %v123 = vsel %vm122, %v118, 0.0
        %v124 = vsel %vm122, %v119, 0.0
        %v125 = vadd.f32 %v123, %v124
        %v126 = vsel %vm122, %v120, 0.0
        %v127 = vsel %vm122, %v121, 0.0
        %v128 = vadd.f32 %v126, %v127
        %v129 = vmul.f32 %v125, 0.5
        %v130 = vmul.f32 %v128, 0.5
        %131 = vst.msk [vmem:[%s110] sm:$0x3] %vm122, %v129
        %132 = vst.msk [vmem:[%s110 + $0x2] sm:$0x3] %vm122, %v130
        %s133 = sand.u32 %s49, 1
        %s134 = scalar_lea.sflag [#allocation3], %s133
        %s135 = sand.u32 %s49, 1
        %s136 = smul.addr %s135, 4
        %s137 = scalar_lea.vmem [#allocation2], %s136
        // Predicated region
        $region25: #{tpu_custom_call.1} parent=23 // pred_check
          %p138 = pneg %p59
        $region26: #{tpu_custom_call.1} parent=23 // pred_check_branch
          %140 = sbr.rel (%p138) target = $region28
        $region27: #{tpu_custom_call.1} parent=23 // pred_region
          %s141 = smul.u32 2, %s15
          %s143 = ssub.s32 64, 64
          %144 = vsyncadd %s134, %s143
          %s145 = smul.addr %s141, 32
          %s146 = scalar_lea.hbm %s1, %s145
          %s147 = sshll.u32 %s137, 4
          %s148 = int_to_ptr.vmem [resolvable:$true] %s147
          %153 = dma.vmem_to_hbm [thread:$0]  %s148, 64, %s146, %s134, 32, 32, 2
        $region28: #{tpu_custom_call.1} parent=23 // pred_fallthru
          _
      $region24: #{tpu_custom_call.1} parent=5 // pred_fallthru
        _
      %p154 = scmp.le.s32.totalorder 2, %s10
      // Predicated region
      $region29: #{tpu_custom_call.1} parent=5 // pred_check
        %p155 = pneg %p154
      $region30: #{tpu_custom_call.1} parent=5 // pred_check_branch
        %157 = sbr.rel (%p155) target = $region32
      $region31: #{tpu_custom_call.1} parent=5 // pred_region
        %s158 = ssub.s32 %s10, 2
        // Predicated region
        $region33: #{tpu_custom_call.1} parent=31 // pred_check
          %p159 = pneg %p65
        $region34: #{tpu_custom_call.1} parent=31 // pred_check_branch
          %161 = sbr.rel (%p159) target = $region36
        $region35: #{tpu_custom_call.1} parent=31 // pred_region
          %s162 = sand.u32 %s50, 1
          %s163 = scalar_lea.sflag [#allocation3], %s162
          %s164 = sand.u32 %s50, 1
          %s165 = smul.addr %s164, 4
          %s166 = scalar_lea.vmem [#allocation2], %s165
          %167 = dma.done %s163, 64
        $region36: #{tpu_custom_call.1} parent=31 // pred_fallthru
          _
      $region32: #{tpu_custom_call.1} parent=5 // pred_fallthru
        _
    $region6: #{tpu_custom_call.1} parent=1 // loop_footer
      %s14 = sadd.s32 1, %s10
    $region7: #{tpu_custom_call.1} parent=1 // loop_footer_branch
      %9 = sbr.rel target = $region3
    $region8: #{tpu_custom_call.1} parent=1 // loop_exit
      _
    %168 = vsyncpa [#allocation3], 1
    %s169 = scalar_lea.sflag [#allocation3], 1
    %170 = vsyncpa %s169, 1

</llo_original>
